<compile_context>
chip_gen: v5e
topology: v5e:2x2
jax: 0.10.0
libtpu: 0.0.40
codegen_flags: <defaults>
</compile_context>

<pallas_src>
import math
import functools

import jax
import jax.numpy as jnp
from jax.experimental import pallas as pl
from jax.experimental.pallas import tpu as pltpu


_INV_SQRT2 = 1.0 / math.sqrt(2.0)

# Conservative on-chip budget for the pipelined working set (v7x has 64 MiB
# VMEM per TensorCore; leave headroom for compiler scratch).
_VMEM_BUDGET_BYTES = 48 * 1024 * 1024
_VMEM_LIMIT_CAP = 56 * 1024 * 1024


def _mlp_kernel(x_ref, wu_ref, bu_ref, wd_ref, bd_ref, o_ref, acc_ref):
    """One (row-tile i, hidden-tile j) step of y = gelu(x @ Wu + bu) @ Wd + bd.

    Grid is (M // tm, H // th). The hidden axis is a reduction (last,
    "arbitrary"); partial down-projections accumulate into an f32 VMEM scratch.
    """
    j = pl.program_id(1)

    @pl.when(j == 0)
    def _init():
        acc_ref[...] = jnp.zeros_like(acc_ref)

    # Up projection for this hidden tile (MXU, f32 accumulation).
    h = jnp.dot(x_ref[...], wu_ref[...], preferred_element_type=jnp.float32)
    h = h + bu_ref[...].astype(jnp.float32)            # (tm, th) + (1, th)

    # Exact GELU: 0.5 * h * (1 + erf(h / sqrt(2)))  == nn.GELU(approximate='none'),
    # kept in f32 on the VPU.
    h = 0.5 * h * (1.0 + jax.lax.erf(h * jnp.float32(_INV_SQRT2)))

    # Partial down projection for this hidden tile, accumulated in f32.
    acc_ref[...] += jnp.dot(h.astype(wd_ref.dtype), wd_ref[...],
                            preferred_element_type=jnp.float32)

    @pl.when(j == pl.num_programs(1) - 1)
    def _finalize():
        # b_down added exactly once, in the finalize branch.
        o_ref[...] = (acc_ref[...] + bd_ref[...].astype(jnp.float32)
                      ).astype(o_ref.dtype)


def _round_up(x, m):
    return (x + m - 1) // m * m


def _working_set_bytes(tm, th, d, itemsize):
    """Double-buffered input/output tiles + f32 accumulator (bytes)."""
    dbuf = 2 * itemsize * (tm * d        # x tile
                           + d * th      # W_up tile
                           + th          # b_up tile
                           + th * d      # W_down tile
                           + d           # b_down
                           + tm * d)     # out tile
    return dbuf + 4 * tm * d             # f32 accumulator scratch


@functools.partial(jax.jit, static_argnames=("tm", "th"))
def mpt_mlp(x, w_up, b_up, w_down, b_down, *, tm=256, th=512):
    """MPTMLP forward: down_proj(GELU(up_proj(x))).

    x: (B, S, D). w_up: (D, H), b_up: (H,), w_down: (H, D), b_down: (D,).
    tm: row tile (multiple of 8). th: hidden tile (multiple of 128).
    """
    assert tm % 8 == 0, "row tile must be a multiple of 8 (sublane)"
    assert th % 128 == 0, "hidden tile must be a multiple of 128 (lane)"

    B, S, D = x.shape
    H = w_up.shape[1]
    M = B * S

    itemsize = max(x.dtype.itemsize, w_up.dtype.itemsize)

    # Effective tiles: shrink for small problems but keep (8, 128) alignment.
    tm_eff = min(tm, _round_up(M, 8))
    th_eff = min(th, _round_up(H, 128))

    # Auto-shrink the hidden tile until the pipelined working set fits the
    # conservative VMEM budget (keeps the kernel valid on v7x's 64 MiB VMEM
    # even for large d_model).
    while (th_eff > 128
           and _working_set_bytes(tm_eff, th_eff, D, itemsize) > _VMEM_BUDGET_BYTES):
        th_eff //= 2
    th_eff = max(128, (th_eff // 128) * 128)

    M_pad = _round_up(M, tm_eff)
    H_pad = _round_up(H, th_eff)

    x2d = x.reshape(M, D)
    if M_pad != M:
        x2d = jnp.pad(x2d, ((0, M_pad - M), (0, 0)))
    if H_pad != H:
        # Zero-padded hidden units contribute exactly 0 (gelu(0) == 0 and the
        # corresponding W_down rows are zero).
        w_up = jnp.pad(w_up, ((0, 0), (0, H_pad - H)))
        b_up = jnp.pad(b_up, ((0, H_pad - H),))
        w_down = jnp.pad(w_down, ((0, H_pad - H), (0, 0)))

    bu2d = b_up.reshape(1, H_pad)
    bd2d = b_down.reshape(1, D)

    grid = (M_pad // tm_eff, H_pad // th_eff)

    working_set = _working_set_bytes(tm_eff, th_eff, D, itemsize)
    vmem_limit = min(int(working_set * 1.5) + (2 << 20), _VMEM_LIMIT_CAP)

    out2d = pl.pallas_call(
        _mlp_kernel,
        out_shape=jax.ShapeDtypeStruct((M_pad, D), x.dtype),
        grid_spec=pltpu.PrefetchScalarGridSpec(
            num_scalar_prefetch=0,
            grid=grid,
            in_specs=[
                pl.BlockSpec((tm_eff, D), lambda i, j: (i, 0)),    # x rows (resident across j)
                pl.BlockSpec((D, th_eff), lambda i, j: (0, j)),    # W_up tile
                pl.BlockSpec((1, th_eff), lambda i, j: (0, j)),    # b_up tile
                pl.BlockSpec((th_eff, D), lambda i, j: (j, 0)),    # W_down tile
                pl.BlockSpec((1, D), lambda i, j: (0, 0)),         # b_down (fetched once)
            ],
            out_specs=pl.BlockSpec((tm_eff, D), lambda i, j: (i, 0)),
            scratch_shapes=[pltpu.VMEM((tm_eff, D), jnp.float32)],
        ),
        compiler_params=pltpu.CompilerParams(
            dimension_semantics=("parallel", "arbitrary"),
            vmem_limit_bytes=vmem_limit,
        ),
    )(x2d, w_up, bu2d, w_down, bd2d)

    return out2d[:M].reshape(B, S, D)


def _reference(x, w_up, b_up, w_down, b_down):
    h = x @ w_up + b_up
    h = 0.5 * h * (1.0 + jax.lax.erf(h / jnp.sqrt(2.0).astype(h.dtype)))
    return h @ w_down + b_down


if __name__ == "__main__":
    # MPTMLP(d_model=128, expansion_ratio=4) -> ffn_hidden_size = 512.
    # d_model chosen as a multiple of 128 so the output is lane-dense.
    batch, seq, d_model = 2, 8, 128
    expansion_ratio = 4
    ffn_hidden = int(d_model * expansion_ratio)

    key = jax.random.PRNGKey(0)
    kx, kwu, kbu, kwd, kbd = jax.random.split(key, 5)

    x = jax.random.normal(kx, (batch, seq, d_model), dtype=jnp.float32)
    # Deterministic synthetic params (nn.Linear weights, stored transposed).
    w_up = jax.random.normal(kwu, (d_model, ffn_hidden), dtype=jnp.float32) * 0.05
    b_up = jax.random.normal(kbu, (ffn_hidden,), dtype=jnp.float32) * 0.05
    w_down = jax.random.normal(kwd, (ffn_hidden, d_model), dtype=jnp.float32) * 0.05
    b_down = jax.random.normal(kbd, (d_model,), dtype=jnp.float32) * 0.05

    # th=256 -> two hidden-tile steps, exercising the streamed-weight /
    # accumulator path; tm shrinks automatically to the 16 available rows.
    out = mpt_mlp(x, w_up, b_up, w_down, b_down, tm=256, th=256)
    out = jax.block_until_ready(out)

    ref = _reference(x, w_up, b_up, w_down, b_down)
    assert out.shape == (batch, seq, d_model)
    assert jnp.allclose(out, ref, atol=1e-5, rtol=1e-5), "mismatch vs reference"

    print("KERNEL_OK")
</pallas_src>

<mosaic_0001>
module attributes {stable_mosaic.version = 11 : i64} {
  func.func @_mlp_kernel(%arg0: i32, %arg1: i32, %arg2: memref<16x128xf32, #tpu.memory_space<vmem>>, %arg3: memref<128x256xf32, #tpu.memory_space<vmem>>, %arg4: memref<1x256xf32, #tpu.memory_space<vmem>>, %arg5: memref<256x128xf32, #tpu.memory_space<vmem>>, %arg6: memref<1x128xf32, #tpu.memory_space<vmem>>, %arg7: memref<16x128xf32, #tpu.memory_space<vmem>>, %arg8: memref<16x128xf32, #tpu.memory_space<vmem>>) attributes {dimension_semantics = [#tpu.dimension_semantics<parallel>, #tpu.dimension_semantics<arbitrary>], iteration_bounds = array<i64: 1, 2>, scalar_prefetch = 0 : i64, scratch_operands = 1 : i64, tpu.core_type = #tpu.core_type<tc>, window_params = [{transform_indices = @transform_0, window_bounds = array<i64: 16, 128>}, {transform_indices = @transform_1, window_bounds = array<i64: 128, 256>}, {transform_indices = @transform_2, window_bounds = array<i64: 1, 256>}, {transform_indices = @transform_3, window_bounds = array<i64: 256, 128>}, {pipeline_mode = #tpu.pipeline_mode<synchronous>, transform_indices = @transform_4, window_bounds = array<i64: 1, 128>}, {transform_indices = @transform_5, window_bounds = array<i64: 16, 128>}]} {
    %c0_i32 = arith.constant 0 : i32
    %0 = arith.cmpi eq, %arg1, %c0_i32 : i32
    %1 = arith.extui %0 : i1 to i32
    %c0_i32_0 = arith.constant 0 : i32
    %2 = arith.cmpi ne, %1, %c0_i32_0 : i32
    scf.if %2 {
      %cst_17 = arith.constant 0.000000e+00 : f32
      %25 = vector.broadcast %cst_17 : f32 to vector<16x128xf32>
      %c0_18 = arith.constant 0 : index
      %c0_19 = arith.constant 0 : index
      %26 = vector.load %arg8[%c0_18, %c0_19] : memref<16x128xf32, #tpu.memory_space<vmem>>, vector<16x128xf32>
      tpu.vector_store %arg8[%c0_18, %c0_19], %25 {strides = array<i32>} : memref<16x128xf32, #tpu.memory_space<vmem>>, vector<16x128xf32>,
    } else {
    }
    %c0 = arith.constant 0 : index
    %c0_1 = arith.constant 0 : index
    %3 = vector.load %arg2[%c0, %c0_1] : memref<16x128xf32, #tpu.memory_space<vmem>>, vector<16x128xf32>
    %c0_2 = arith.constant 0 : index
    %c0_3 = arith.constant 0 : index
    %4 = vector.load %arg3[%c0_2, %c0_3] : memref<128x256xf32, #tpu.memory_space<vmem>>, vector<128x256xf32>
    %cst = arith.constant dense<0.000000e+00> : vector<16x256xf32>
    %5 = tpu.matmul %3, %4, %cst {dimension_numbers = #tpu.dot_dimension_numbers<[1], [0], [0], [1], [0, 0, 1, 1], [], []>} : vector<16x128xf32>, vector<128x256xf32>, vector<16x256xf32> -> vector<16x256xf32>
    %c0_4 = arith.constant 0 : index
    %c0_5 = arith.constant 0 : index
    %6 = vector.load %arg4[%c0_4, %c0_5] : memref<1x256xf32, #tpu.memory_space<vmem>>, vector<1x256xf32>
    %7 = vector.broadcast %6 : vector<1x256xf32> to vector<16x256xf32>
    %8 = arith.addf %5, %7 : vector<16x256xf32>
    %cst_6 = arith.constant 5.000000e-01 : f32
    %9 = vector.broadcast %cst_6 : f32 to vector<16x256xf32>
    %10 = arith.mulf %9, %8 : vector<16x256xf32>
    %cst_7 = arith.constant 0.707106769 : f32
    %11 = vector.broadcast %cst_7 : f32 to vector<16x256xf32>
    %12 = arith.mulf %8, %11 : vector<16x256xf32>
    %13 = math.erf %12 : vector<16x256xf32>
    %cst_8 = arith.constant 1.000000e+00 : f32
    %14 = vector.broadcast %cst_8 : f32 to vector<16x256xf32>
    %15 = arith.addf %14, %13 : vector<16x256xf32>
    %16 = arith.mulf %10, %15 : vector<16x256xf32>
    %c0_9 = arith.constant 0 : index
    %c0_10 = arith.constant 0 : index
    %17 = vector.load %arg8[%c0_9, %c0_10] : memref<16x128xf32, #tpu.memory_space<vmem>>, vector<16x128xf32>
    %c0_11 = arith.constant 0 : index
    %c0_12 = arith.constant 0 : index
    %18 = vector.load %arg5[%c0_11, %c0_12] : memref<256x128xf32, #tpu.memory_space<vmem>>, vector<256x128xf32>
    %cst_13 = arith.constant dense<0.000000e+00> : vector<16x128xf32>
    %19 = tpu.matmul %16, %18, %cst_13 {dimension_numbers = #tpu.dot_dimension_numbers<[1], [0], [0], [1], [0, 0, 1, 1], [], []>} : vector<16x256xf32>, vector<256x128xf32>, vector<16x128xf32> -> vector<16x128xf32>
    %20 = arith.addf %17, %19 : vector<16x128xf32>
    %c0_14 = arith.constant 0 : index
    %c0_15 = arith.constant 0 : index
    %21 = vector.load %arg8[%c0_14, %c0_15] : memref<16x128xf32, #tpu.memory_space<vmem>>, vector<16x128xf32>
    tpu.vector_store %arg8[%c0_14, %c0_15], %20 {strides = array<i32>} : memref<16x128xf32, #tpu.memory_space<vmem>>, vector<16x128xf32>,
    %c1_i32 = arith.constant 1 : i32
    %22 = arith.cmpi eq, %arg1, %c1_i32 : i32
    %23 = arith.extui %22 : i1 to i32
    %c0_i32_16 = arith.constant 0 : i32
    %24 = arith.cmpi ne, %23, %c0_i32_16 : i32
    scf.if %24 {
      %c0_17 = arith.constant 0 : index
      %c0_18 = arith.constant 0 : index
      %25 = vector.load %arg8[%c0_17, %c0_18] : memref<16x128xf32, #tpu.memory_space<vmem>>, vector<16x128xf32>
      %c0_19 = arith.constant 0 : index
      %c0_20 = arith.constant 0 : index
      %26 = vector.load %arg6[%c0_19, %c0_20] : memref<1x128xf32, #tpu.memory_space<vmem>>, vector<1x128xf32>
      %27 = vector.broadcast %26 : vector<1x128xf32> to vector<16x128xf32>
      %28 = arith.addf %25, %27 : vector<16x128xf32>
      %c0_21 = arith.constant 0 : index
      %c0_22 = arith.constant 0 : index
      %29 = vector.load %arg7[%c0_21, %c0_22] : memref<16x128xf32, #tpu.memory_space<vmem>>, vector<16x128xf32>
      tpu.vector_store %arg7[%c0_21, %c0_22], %28 {strides = array<i32>} : memref<16x128xf32, #tpu.memory_space<vmem>>, vector<16x128xf32>,
    } else {
    }
    return
  }
  func.func @transform_0(%arg0: i32, %arg1: i32) -> (i32, i32) {
    %c0_i32 = arith.constant 0 : i32
    %c0_i32_0 = arith.constant 0 : i32
    return %arg0, %c0_i32 : i32, i32
  }
  func.func @transform_1(%arg0: i32, %arg1: i32) -> (i32, i32) {
    %c0_i32 = arith.constant 0 : i32
    %c0_i32_0 = arith.constant 0 : i32
    return %c0_i32, %arg1 : i32, i32
  }
  func.func @transform_2(%arg0: i32, %arg1: i32) -> (i32, i32) {
    %c0_i32 = arith.constant 0 : i32
    %c0_i32_0 = arith.constant 0 : i32
    return %c0_i32, %arg1 : i32, i32
  }
  func.func @transform_3(%arg0: i32, %arg1: i32) -> (i32, i32) {
    %c0_i32 = arith.constant 0 : i32
    %c0_i32_0 = arith.constant 0 : i32
    return %arg1, %c0_i32 : i32, i32
  }
  func.func @transform_4(%arg0: i32, %arg1: i32) -> (i32, i32) {
    %c0_i32 = arith.constant 0 : i32
    %c0_i32_0 = arith.constant 0 : i32
    %c0_i32_1 = arith.constant 0 : i32
    return %c0_i32, %c0_i32_0 : i32, i32
  }
  func.func @transform_5(%arg0: i32, %arg1: i32) -> (i32, i32) {
    %c0_i32 = arith.constant 0 : i32
    %c0_i32_0 = arith.constant 0 : i32
    return %arg0, %c0_i32 : i32, i32
  }
}

</mosaic_0001>

<llo_original>
// kernel: mpt_mlp.1
$region0: #{mpt_mlp.1}
  #allocation0 [shape = 'u32[]', space=smem, size = 0x4, offset = 0x4, fixed_abs, tag = 'smem constant byte address 0x4 - core index']
  #allocation1 [shape = 'u32[72,128]{1,0:T(1,128)}', space=vmem, size = 0x9000, scoped, tag = 'internal scratch']
  #allocation2 [shape = 'f32[16,128]{1,0:T(8,128)}', space=vmem, size = 0x2000, scoped, tag = 'scratch operand']
  %s0 = inlined_call_operand.hbm [shape: f32[16,128], index: 0, kind: input, shape index: {}]
  %s1 = inlined_call_operand.hbm [shape: f32[128,512], index: 1, kind: input, shape index: {}]
  %s2 = inlined_call_operand.vmem [shape: f32[1,512], index: 2, kind: input, shape index: {}]
  %s3 = inlined_call_operand.hbm [shape: f32[512,128], index: 3, kind: input, shape index: {}]
  %s4 = inlined_call_operand.vmem [shape: f32[1,128], index: 4, kind: input, shape index: {}]
  %s5 = inlined_call_operand.hbm [shape: f32[16,128], index: 5, kind: output, shape index: {}]
  %s6 = sld [smem:[#allocation0]]
  $region73: #{mpt_mlp.1} parent=0
    _
  %s8 = ssub.s32 1, %s6
  %s9 = scalar_select 0, %s8, %s6
  $region1: #{mpt_mlp.1} parent=0
    #allocation3 [shape = 'u8[8192]{0}', space=vmem, size = 0x2000, scoped, tag = 'input window, operand 0, single buffered']
    #allocation4 [shape = 's32[2]{0}', space=sflag, size = 0x8, scoped, tag = 'scoped memory for mpt_mlp.1']
    #allocation5 [shape = 's32[2]{0}', space=sflag, size = 0x8, scoped, tag = 'scoped memory for mpt_mlp.1']
    #allocation6 [shape = 'u8[262144]{0}', space=vmem, size = 0x40000, scoped, tag = 'input window, operand 1']
    #allocation7 [shape = 's32[2]{0}', space=sflag, size = 0x8, scoped, tag = 'scoped memory for mpt_mlp.1']
    #allocation8 [shape = 'u8[262144]{0}', space=vmem, size = 0x40000, scoped, tag = 'input window, operand 3']
    #allocation9 [shape = 'u8[8192]{0}', space=vmem, size = 0x2000, scoped, tag = 'output window, operand 0, single buffered']
    %10 = vsyncpa [#allocation4], 0
    %11 = vsyncpa [#allocation7], 0
    %s12 = scalar_lea.sflag [#allocation7], 1
    %13 = vsyncpa %s12, 0
    %14 = vsyncpa [#allocation5], 0
    loop: start=0, step=1, limit=4
    $region2: #{mpt_mlp.1} parent=1 // loop_pre_header
      _
    $region3: #{mpt_mlp.1} parent=1 // loop_header
      %s16 = sphi 0, %s20
      %p17 = scmp.ge.s32.totalorder %s16, 4
      %s23 = sphi 0, %s35
      %s24 = sphi 0, %s31
      %s25 = sphi 0, %s23
      %s26 = sphi 0, %s24
      %s27 = sphi 0, %s25
      %s28 = sphi 0, %s26
      %s38 = sphi 0, %s40
      %s41 = sphi 0, %s38
      %s42 = sphi 0, %s41
      %s58 = sphi 0, %s42
      %s64 = sphi 0, %s66
      %s67 = sphi 0, %s64
      %s68 = sphi 0, %s67
      %s84 = sphi 0, %s68
      %s90 = sphi 0, %s92
      %s93 = sphi 0, %s90
      %s94 = sphi 0, %s93
      %s110 = sphi 0, %s94
      %s116 = sphi 0, %s118
      %s119 = sphi 0, %s116
      %s120 = sphi 0, %s119
      %s136 = sphi 0, %s120
      %s140 = sphi 0, %s140
      %s142 = sphi 0, %s140
      %s143 = sphi 0, %s142
      %s157 = sphi 0, %s143
      %s163 = sphi 0, %s165
      %s166 = sphi 0, %s163
      %s167 = sphi 0, %s166
      %s183 = sphi 0, %s167
    $region4: #{mpt_mlp.1} parent=1 // loop_header_branch
      %19 = sbr.rel (%p17) target = $region8
    $region5: #{mpt_mlp.1} parent=1 // loop_body
      %s21 = ssub.s32 %s16, 1
      %s22 = ssub.s32 %s16, 2
      %s29 = sadd.s32 1, %s24
      %p30 = scmp.ge.s32.totalorder %s29, 2
      %s31 = scalar_select %p30, 0, %s29
      %s32 = sadd.s32 1, %s23
      %s33 = scalar_select %p30, %s32, %s23
      %p34 = scmp.ge.s32.totalorder %s33, 1
      %s35 = scalar_select %p34, 0, %s33
      %s36 = ssub.s32 %s23, %s35
      %p37 = scmp.eq.s32.totalorder %s36, 0
      %s39 = sadd.s32 %s38, 1
      %s40 = scalar_select %p37, %s38, %s39
      %p43 = pneg %p37
      %p44 = scmp.eq.s32.totalorder %s16, 1
      %p45 = por %p43, %p44
      %p46 = scmp.ne.s32.totalorder %s38, %s41
      %p47 = scmp.eq.s32.totalorder %s16, 0
      %p48 = por %p46, %p47
      %p49 = scmp.ne.s32.totalorder %s38, %s41
      %p50 = scmp.eq.s32.totalorder %s21, 1
      %p51 = por %p49, %p50
      %p52 = scmp.ne.s32.totalorder %s41, %s42
      %p53 = scmp.eq.s32.totalorder %s21, 0
      %p54 = por %p52, %p53
      %p55 = scmp.ne.s32.totalorder %s41, %s42
      %p56 = scmp.eq.s32.totalorder %s22, 1
      %p57 = por %p55, %p56
      %p59 = scmp.ne.s32.totalorder %s42, %s58
      %p60 = scmp.eq.s32.totalorder %s22, 0
      %p61 = por %p59, %p60
      %s62 = ssub.s32 %s24, %s31
      %p63 = scmp.eq.s32.totalorder %s62, 0
      %s65 = sadd.s32 %s64, 1
      %s66 = scalar_select %p63, %s64, %s65
      %p69 = pneg %p63
      %p70 = scmp.eq.s32.totalorder %s16, 1
      %p71 = por %p69, %p70
      %p72 = scmp.ne.s32.totalorder %s64, %s67
      %p73 = scmp.eq.s32.totalorder %s16, 0
      %p74 = por %p72, %p73
      %p75 = scmp.ne.s32.totalorder %s64, %s67
      %p76 = scmp.eq.s32.totalorder %s21, 1
      %p77 = por %p75, %p76
      %p78 = scmp.ne.s32.totalorder %s67, %s68
      %p79 = scmp.eq.s32.totalorder %s21, 0
      %p80 = por %p78, %p79
      %p81 = scmp.ne.s32.totalorder %s67, %s68
      %p82 = scmp.eq.s32.totalorder %s22, 1
      %p83 = por %p81, %p82
      %p85 = scmp.ne.s32.totalorder %s68, %s84
      %p86 = scmp.eq.s32.totalorder %s22, 0
      %p87 = por %p85, %p86
      %s88 = ssub.s32 %s24, %s31
      %p89 = scmp.eq.s32.totalorder %s88, 0
      %s91 = sadd.s32 %s90, 1
      %s92 = scalar_select %p89, %s90, %s91
      %p95 = pneg %p89
      %p96 = scmp.eq.s32.totalorder %s16, 1
      %p97 = por %p95, %p96
      %p98 = scmp.ne.s32.totalorder %s90, %s93
      %p99 = scmp.eq.s32.totalorder %s16, 0
      %p100 = por %p98, %p99
      %p101 = scmp.ne.s32.totalorder %s90, %s93
      %p102 = scmp.eq.s32.totalorder %s21, 1
      %p103 = por %p101, %p102
      %p104 = scmp.ne.s32.totalorder %s93, %s94
      %p105 = scmp.eq.s32.totalorder %s21, 0
      %p106 = por %p104, %p105
      %p107 = scmp.ne.s32.totalorder %s93, %s94
      %p108 = scmp.eq.s32.totalorder %s22, 1
      %p109 = por %p107, %p108
      %p111 = scmp.ne.s32.totalorder %s94, %s110
      %p112 = scmp.eq.s32.totalorder %s22, 0
      %p113 = por %p111, %p112
      %s114 = ssub.s32 %s24, %s31
      %p115 = scmp.eq.s32.totalorder %s114, 0
      %s117 = sadd.s32 %s116, 1
      %s118 = scalar_select %p115, %s116, %s117
      %p121 = pneg %p115
      %p122 = scmp.eq.s32.totalorder %s16, 1
      %p123 = por %p121, %p122
      %p124 = scmp.ne.s32.totalorder %s116, %s119
      %p125 = scmp.eq.s32.totalorder %s16, 0
      %p126 = por %p124, %p125
      %p127 = scmp.ne.s32.totalorder %s116, %s119
      %p128 = scmp.eq.s32.totalorder %s21, 1
      %p129 = por %p127, %p128
      %p130 = scmp.ne.s32.totalorder %s119, %s120
      %p131 = scmp.eq.s32.totalorder %s21, 0
      %p132 = por %p130, %p131
      %p133 = scmp.ne.s32.totalorder %s119, %s120
      %p134 = scmp.eq.s32.totalorder %s22, 1
      %p135 = por %p133, %p134
      %p137 = scmp.ne.s32.totalorder %s120, %s136
      %p138 = scmp.eq.s32.totalorder %s22, 0
      %p139 = por %p137, %p138
      %s141 = sadd.s32 %s140, 1
      %p144 = scmp.eq.s32.totalorder %s16, 1
      %p145 = scmp.ne.s32.totalorder %s140, %s142
      %p146 = scmp.eq.s32.totalorder %s16, 0
      %p147 = por %p145, %p146
      %p148 = scmp.ne.s32.totalorder %s140, %s142
      %p149 = scmp.eq.s32.totalorder %s21, 1
      %p150 = por %p148, %p149
      %p151 = scmp.ne.s32.totalorder %s142, %s143
      %p152 = scmp.eq.s32.totalorder %s21, 0
      %p153 = por %p151, %p152
      %p154 = scmp.ne.s32.totalorder %s142, %s143
      %p155 = scmp.eq.s32.totalorder %s22, 1
      %p156 = por %p154, %p155
      %p158 = scmp.ne.s32.totalorder %s143, %s157
      %p159 = scmp.eq.s32.totalorder %s22, 0
      %p160 = por %p158, %p159
      %s161 = ssub.s32 %s23, %s35
      %p162 = scmp.eq.s32.totalorder %s161, 0
      %s164 = sadd.s32 %s163, 1
      %s165 = scalar_select %p162, %s163, %s164
      %p168 = pneg %p162
      %p169 = scmp.eq.s32.totalorder %s16, 1
      %p170 = por %p168, %p169
      %p171 = scmp.ne.s32.totalorder %s163, %s166
      %p172 = scmp.eq.s32.totalorder %s16, 0
      %p173 = por %p171, %p172
      %p174 = scmp.ne.s32.totalorder %s163, %s166
      %p175 = scmp.eq.s32.totalorder %s21, 1
      %p176 = por %p174, %p175
      %p177 = scmp.ne.s32.totalorder %s166, %s167
      %p178 = scmp.eq.s32.totalorder %s21, 0
      %p179 = por %p177, %p178
      %p180 = scmp.ne.s32.totalorder %s166, %s167
      %p181 = scmp.eq.s32.totalorder %s22, 1
      %p182 = por %p180, %p181
      %p184 = scmp.ne.s32.totalorder %s167, %s183
      %p185 = scmp.eq.s32.totalorder %s22, 0
      %p186 = por %p184, %p185
      %p187 = scmp.le.s32.totalorder 1, %s16
      %p188 = scmp.lt.s32.totalorder %s16, 3
      %p189 = pnand %p187, %p188
      %p190 = pneg %p189
      // Predicated region
      $region9: #{mpt_mlp.1} parent=5 // pred_check
        _
      $region10: #{mpt_mlp.1} parent=5 // pred_check_branch
        %192 = sbr.rel (%p189) target = $region12
      $region11: #{mpt_mlp.1} parent=5 // pred_region
        %s193 = ssub.s32 %s16, 1
        // Predicated region
        $region13: #{mpt_mlp.1} parent=11 // pred_check
          %p194 = pneg %p54
        $region14: #{mpt_mlp.1} parent=11 // pred_check_branch
          %196 = sbr.rel (%p194) target = $region16
        $region15: #{mpt_mlp.1} parent=11 // pred_region
          %s197 = smul.u32 2, %s25
          %199 = vsyncadd [#allocation4], 0
          %s200 = smul.addr %s197, 8
          %s201 = scalar_lea.hbm %s0, %s200
          %s202 = sshll.u32 %s201, 4
          %s203 = int_to_ptr.hbm [resolvable:$true] %s202
          %s204 = sshll.u32 [#allocation3], 4
          %s205 = int_to_ptr.vmem [resolvable:$true] %s204
          %210 = dma.hbm_to_vmem [thread:$0]  %s203, 256, %s205, [#allocation4], 128, 128, 8
        $region16: #{mpt_mlp.1} parent=11 // pred_fallthru
          _
        // Predicated region
        $region17: #{mpt_mlp.1} parent=11 // pred_check
          %p211 = pneg %p153
        $region18: #{mpt_mlp.1} parent=11 // pred_check_branch
          %213 = sbr.rel (%p211) target = $region20
        $region19: #{mpt_mlp.1} parent=11 // pred_region
          _
        $region20: #{mpt_mlp.1} parent=11 // pred_fallthru
          _
      $region12: #{mpt_mlp.1} parent=5 // pred_fallthru
        _
      %p214 = scmp.lt.s32.totalorder %s16, 2
      // Predicated region
      $region21: #{mpt_mlp.1} parent=5 // pred_check
        %p215 = pneg %p214
      $region22: #{mpt_mlp.1} parent=5 // pred_check_branch
        %217 = sbr.rel (%p215) target = $region24
      $region23: #{mpt_mlp.1} parent=5 // pred_region
        // Predicated region
        $region25: #{mpt_mlp.1} parent=23 // pred_check
          %p218 = pneg %p74
        $region26: #{mpt_mlp.1} parent=23 // pred_check_branch
          %220 = sbr.rel (%p218) target = $region28
        $region27: #{mpt_mlp.1} parent=23 // pred_region
          %s221 = sand.u32 %s16, 1
          %s222 = scalar_lea.sflag [#allocation7], %s221
          %s223 = sand.u32 %s64, 1
          %s224 = smul.addr %s223, 256
          %s225 = scalar_lea.vmem [#allocation6], %s224
          %s226 = smul.u32 2, %s24
          %228 = vsyncadd %s222, 0
          %s229 = smul.addr %s226, 8
          %s230 = scalar_lea.hbm %s1, %s229
          %s231 = sshll.u32 %s230, 4
          %s232 = int_to_ptr.hbm [resolvable:$true] %s231
          %s233 = sshll.u32 %s225, 4
          %s234 = int_to_ptr.vmem [resolvable:$true] %s233
          %239 = dma.hbm_to_vmem [thread:$0]  %s232, 4096, %s234, %s222, 512, 256, 16
        $region28: #{mpt_mlp.1} parent=23 // pred_fallthru
          _
        // Predicated region
        $region29: #{mpt_mlp.1} parent=23 // pred_check
          %p240 = pneg %p100
        $region30: #{mpt_mlp.1} parent=23 // pred_check_branch
          %242 = sbr.rel (%p240) target = $region32
        $region31: #{mpt_mlp.1} parent=23 // pred_region
          %s243 = smul.u32 2, %s24
          %p244 = scmp.lt.s32.totalorder %s243, 3
          %s245 = scalar_select %p244, %s243, 3
          %s246 = scalar_lea.vmem %s2, %s245
          %s247 = smul.u32 2, %s24
        $region32: #{mpt_mlp.1} parent=23 // pred_fallthru
          _
        // Predicated region
        $region33: #{mpt_mlp.1} parent=23 // pred_check
          %p248 = pneg %p126
        $region34: #{mpt_mlp.1} parent=23 // pred_check_branch
          %250 = sbr.rel (%p248) target = $region36
        $region35: #{mpt_mlp.1} parent=23 // pred_region
          %s251 = sand.u32 %s16, 1
          %s252 = scalar_lea.sflag [#allocation7], %s251
          %s253 = sand.u32 %s116, 1
          %s254 = smul.addr %s253, 256
          %s255 = scalar_lea.vmem [#allocation8], %s254
          %s256 = smul.u32 32, %s24
          %258 = vsyncadd %s252, 0
          %s259 = smul.addr %s256, 8
          %s260 = scalar_lea.hbm %s3, %s259
          %s261 = sshll.u32 %s260, 4
          %s262 = int_to_ptr.hbm [resolvable:$true] %s261
          %s263 = sshll.u32 %s255, 4
          %s264 = int_to_ptr.vmem [resolvable:$true] %s263
          %269 = dma.hbm_to_vmem [thread:$0]  %s262, 4096, %s264, %s252, 128, 128, 8
        $region36: #{mpt_mlp.1} parent=23 // pred_fallthru
          _
      $region24: #{mpt_mlp.1} parent=5 // pred_fallthru
        _
      %p270 = scmp.le.s32.totalorder 1, %s16
      %p271 = scmp.lt.s32.totalorder %s16, 3
      %p272 = pnand %p270, %p271
      %p273 = pneg %p272
      // Predicated region
      $region37: #{mpt_mlp.1} parent=5 // pred_check
        _
      $region38: #{mpt_mlp.1} parent=5 // pred_check_branch
        %275 = sbr.rel (%p272) target = $region40
      $region39: #{mpt_mlp.1} parent=5 // pred_region
        %s276 = ssub.s32 %s16, 1
        // Predicated region
        $region41: #{mpt_mlp.1} parent=39 // pred_check
          %p277 = pneg %p54
        $region42: #{mpt_mlp.1} parent=39 // pred_check_branch
          %279 = sbr.rel (%p277) target = $region44
        $region43: #{mpt_mlp.1} parent=39 // pred_region
          %281 = dma.done [#allocation4], 256
        $region44: #{mpt_mlp.1} parent=39 // pred_fallthru
          _
        %s282 = sand.u32 %s21, 1
        %s283 = scalar_lea.sflag [#allocation7], %s282
        %s284 = sand.u32 %s67, 1
        %s285 = smul.addr %s284, 256
        %s286 = scalar_lea.vmem [#allocation6], %s285
        // Predicated region
        $region45: #{mpt_mlp.1} parent=39 // pred_check
          %p287 = pneg %p80
        $region46: #{mpt_mlp.1} parent=39 // pred_check_branch
          %289 = sbr.rel (%p287) target = $region48
        $region47: #{mpt_mlp.1} parent=39 // pred_region
          %291 = dma.done %s283, 4096
        $region48: #{mpt_mlp.1} parent=39 // pred_fallthru
          _
        %s292 = sand.u32 %s21, 1
        %s293 = scalar_lea.sflag [#allocation7], %s292
        %s294 = sand.u32 %s119, 1
        %s295 = smul.addr %s294, 256
        %s296 = scalar_lea.vmem [#allocation8], %s295
        // Predicated region
        $region49: #{mpt_mlp.1} parent=39 // pred_check
          %p297 = pneg %p132
        $region50: #{mpt_mlp.1} parent=39 // pred_check_branch
          %299 = sbr.rel (%p297) target = $region52
        $region51: #{mpt_mlp.1} parent=39 // pred_region
          %301 = dma.done %s293, 4096
        $region52: #{mpt_mlp.1} parent=39 // pred_fallthru
          _
        %p302 = pneg %p54
        %p303 = pneg %p51
        %s304 = sand.u32 %s21, 1
        %s305 = scalar_lea.sflag [#allocation7], %s304
        %s306 = sand.u32 %s67, 1
        %s307 = smul.addr %s306, 256
        %s308 = scalar_lea.vmem [#allocation6], %s307
        %p309 = pneg %p80
        %p310 = pneg %p77
        %s311 = smul.u32 2, %s26
        %p312 = scmp.lt.s32.totalorder %s311, 3
        %s313 = scalar_select %p312, %s311, 3
        %s314 = scalar_lea.vmem %s2, %s313
        %p315 = pneg %p106
        %p316 = pneg %p103
        %s317 = sand.u32 %s21, 1
        %s318 = scalar_lea.sflag [#allocation7], %s317
        %s319 = sand.u32 %s119, 1
        %s320 = smul.addr %s319, 256
        %s321 = scalar_lea.vmem [#allocation8], %s320
        %p322 = pneg %p132
        %p323 = pneg %p129
        %p324 = pneg %p153
        %p325 = pneg %p150
        %p326 = pneg %p179
        %p327 = pneg %p176
        %s328 = smul.u32 2, %s25
        %s329 = smul.u32 2, %s26
        %s330 = smul.u32 2, %s26
        %p331 = scmp.lt.s32.totalorder %s330, 3
        %s332 = scalar_select %p331, %s330, 3
        %s333 = scalar_lea.vmem %s2, %s332
        %s334 = smul.u32 2, %s26
        %s335 = smul.u32 32, %s26
        %s336 = smul.u32 2, %s25
        %p337 = scmp.eq.s32.totalorder %s26, 0
        // Predicated region
        $region53: #{mpt_mlp.1} parent=39 // pred_check
          %p338 = pneg %p337
        $region54: #{mpt_mlp.1} parent=39 // pred_check_branch
          %340 = sbr.rel (%p338) target = $region56
        $region55: #{mpt_mlp.1} parent=39 // pred_region
          %341 = vst [vmem:[#allocation2] sm:$0xff] 0.0
          %342 = vst [vmem:[#allocation2 + $0x8] sm:$0xff] 0.0
        $region56: #{mpt_mlp.1} parent=39 // pred_fallthru
          _
        %v343 = vld [vmem:[#allocation3] sm:$0xff]
        %v344 = vld [vmem:[#allocation3 + $0x8] sm:$0xff]
        %v345 = vld [vmem:[%s286] sm:$0xff]
        %v346 = vld [vmem:[%s286 + $0x8] sm:$0xff]
        %v347 = vld [vmem:[%s286 + $0x10] sm:$0xff]
        %v348 = vld [vmem:[%s286 + $0x18] sm:$0xff]
        %v349 = vld [vmem:[%s286 + $0x20] sm:$0xff]
        %v350 = vld [vmem:[%s286 + $0x28] sm:$0xff]
        %v351 = vld [vmem:[%s286 + $0x30] sm:$0xff]
        %v352 = vld [vmem:[%s286 + $0x38] sm:$0xff]
        %v353 = vld [vmem:[%s286 + $0x40] sm:$0xff]
        %v354 = vld [vmem:[%s286 + $0x48] sm:$0xff]
        %v355 = vld [vmem:[%s286 + $0x50] sm:$0xff]
        %v356 = vld [vmem:[%s286 + $0x58] sm:$0xff]
        %v357 = vld [vmem:[%s286 + $0x60] sm:$0xff]
        %v358 = vld [vmem:[%s286 + $0x68] sm:$0xff]
        %v359 = vld [vmem:[%s286 + $0x70] sm:$0xff]
        %v360 = vld [vmem:[%s286 + $0x78] sm:$0xff]
        %v361 = vld [vmem:[%s286 + $0x80] sm:$0xff]
        %v362 = vld [vmem:[%s286 + $0x88] sm:$0xff]
        %v363 = vld [vmem:[%s286 + $0x90] sm:$0xff]
        %v364 = vld [vmem:[%s286 + $0x98] sm:$0xff]
        %v365 = vld [vmem:[%s286 + $0xa0] sm:$0xff]
        %v366 = vld [vmem:[%s286 + $0xa8] sm:$0xff]
        %v367 = vld [vmem:[%s286 + $0xb0] sm:$0xff]
        %v368 = vld [vmem:[%s286 + $0xb8] sm:$0xff]
        %v369 = vld [vmem:[%s286 + $0xc0] sm:$0xff]
        %v370 = vld [vmem:[%s286 + $0xc8] sm:$0xff]
        %v371 = vld [vmem:[%s286 + $0xd0] sm:$0xff]
        %v372 = vld [vmem:[%s286 + $0xd8] sm:$0xff]
        %v373 = vld [vmem:[%s286 + $0xe0] sm:$0xff]
        %v374 = vld [vmem:[%s286 + $0xe8] sm:$0xff]
        %v375 = vld [vmem:[%s286 + $0xf0] sm:$0xff]
        %v376 = vld [vmem:[%s286 + $0xf8] sm:$0xff]
        %v377 = vld [vmem:[%s333] sm:$0x3]
        %v379 = vperm.slane %v377, 0
        %v380 = vperm.slane %v377, 1
        %383 = vmatpush.msra.mxu0 %v375
        %384 = vmatpush.msra.mxu0 %v373
        %385 = vmatpush.msra.mxu0 %v371
        %386 = vmatpush.msra.mxu0 %v369
        %387 = vmatpush.msra.mxu0 %v367
        %388 = vmatpush.msra.mxu0 %v365
        %389 = vmatpush.msra.mxu0 %v363
        %390 = vmatpush.msra.mxu0 %v361
        %391 = vmatpush.msra.mxu0 %v359
        %392 = vmatpush.msra.mxu0 %v357
        %393 = vmatpush.msra.mxu0 %v355
        %394 = vmatpush.msra.mxu0 %v353
        %395 = vmatpush.msra.mxu0 %v351
        %396 = vmatpush.msra.mxu0 %v349
        %397 = vmatpush.msra.mxu0 %v347
        %398 = vmatpush.msra.mxu0 %v345
        %399 = vmatmul.f32.gmra.mxu0 %v343
        %v400 = vpop.f32.mrf.mxu0
        %v401 = vadd.f32 %v379, %v400
        %402 = vmatmul.f32.gmra.mxu0 %v344
        %v403 = vpop.f32.mrf.mxu0
        %v404 = vadd.f32 %v379, %v403
        %405 = vdwg.mxu0
        %406 = vmatpush.msra.mxu0 %v376
        %407 = vmatpush.msra.mxu0 %v374
        %408 = vmatpush.msra.mxu0 %v372
        %409 = vmatpush.msra.mxu0 %v370
        %410 = vmatpush.msra.mxu0 %v368
        %411 = vmatpush.msra.mxu0 %v366
        %412 = vmatpush.msra.mxu0 %v364
        %413 = vmatpush.msra.mxu0 %v362
        %414 = vmatpush.msra.mxu0 %v360
        %415 = vmatpush.msra.mxu0 %v358
        %416 = vmatpush.msra.mxu0 %v356
        %417 = vmatpush.msra.mxu0 %v354
        %418 = vmatpush.msra.mxu0 %v352
        %419 = vmatpush.msra.mxu0 %v350
        %420 = vmatpush.msra.mxu0 %v348
        %421 = vmatpush.msra.mxu0 %v346
        %422 = vmatmul.f32.gmra.mxu0 %v343
        %v423 = vpop.f32.mrf.mxu0
        %v424 = vadd.f32 %v380, %v423
        %425 = vmatmul.f32.gmra.mxu0 %v344
        %v426 = vpop.f32.mrf.mxu0
        %v427 = vadd.f32 %v380, %v426
        %428 = vdwg.mxu0
        %v429 = vmul.f32 %v401, 0.5
        %v430 = vmul.f32 %v424, 0.5
        %v431 = vmul.f32 %v404, 0.5
        %v432 = vmul.f32 %v427, 0.5
        %v433 = vmul.f32 %v401, 0.70710677
        %v434 = vmul.f32 %v424, 0.70710677
        %v435 = vmul.f32 %v404, 0.70710677
        %v436 = vmul.f32 %v427, 0.70710677
        %v437 = vmul.f32 %v433, %v433
        %v438 = vmin.f32 16.0, %v437
        %v439 = vmul.f32 %v438, 2.1237322e-06
        %v440 = vadd.f32 %v439, 0.00028619796
        %v441 = vmul.f32 %v438, %v440
        %v442 = vadd.f32 %v441, 0.0036580483
        %v443 = vmul.f32 %v438, %v442
        %v444 = vadd.f32 %v443, 0.05243302
        %v445 = vmul.f32 %v438, %v444
        %v446 = vadd.f32 %v445, 0.18741608
        %v447 = vmul.f32 %v438, %v446
        %v448 = vadd.f32 %v447, 1.1283791
        %v449 = vmul.f32 %v433, %v448
        %v450 = vmul.f32 %v438, 3.8918573e-05
        %v451 = vadd.f32 %v450, 0.001143296
        %v452 = vmul.f32 %v438, %v451
        %v453 = vadd.f32 %v452, 0.014752088
        %v454 = vmul.f32 %v438, %v453
        %v455 = vadd.f32 %v454, 0.112945676
        %v456 = vmul.f32 %v438, %v455
        %v457 = vadd.f32 %v456, 0.4994258
        %v458 = vmul.f32 %v438, %v457
        %v459 = vadd.f32 %v458, 1.0
        %v460 = vrcp.pop %v459
        %v461 = vmul.f32 %v459, %v460
        %v462 = vsub.f32 1.0, %v461
        %v463 = vmul.f32 %v460, %v462
        %v464 = vadd.f32 %v460, %v463
        %vm465 = vweird.f32 %v459
        %vm466 = vweird.f32 %v460
        %vm467 = vmor %vm465, %vm466
        %v468 = vsel %vm467, %v460, %v464
        %v469 = vand.u32 2147483647, %v459
        %vm470 = vcmp.eq.f32.partialorder %v469, 8.507059e+37
        %v471 = vand.u32 %v459, 2147483648
        %v472 = vor.u32 1.1754944e-38, %v471
        %v473 = vsel %vm470, %v472, %v468
        %v474 = vmul.f32 %v449, %v473
        %v475 = vmin.f32 %v474, 1.0
        %v476 = vmax.f32 %v475, -1.0
        %v477 = vmul.f32 %v434, %v434
        %v478 = vmin.f32 16.0, %v477
        %v479 = vmul.f32 %v478, 2.1237322e-06
        %v480 = vadd.f32 %v479, 0.00028619796
        %v481 = vmul.f32 %v478, %v480
        %v482 = vadd.f32 %v481, 0.0036580483
        %v483 = vmul.f32 %v478, %v482
        %v484 = vadd.f32 %v483, 0.05243302
        %v485 = vmul.f32 %v478, %v484
        %v486 = vadd.f32 %v485, 0.18741608
        %v487 = vmul.f32 %v478, %v486
        %v488 = vadd.f32 %v487, 1.1283791
        %v489 = vmul.f32 %v434, %v488
        %v490 = vmul.f32 %v478, 3.8918573e-05
        %v491 = vadd.f32 %v490, 0.001143296
        %v492 = vmul.f32 %v478, %v491
        %v493 = vadd.f32 %v492, 0.014752088
        %v494 = vmul.f32 %v478, %v493
        %v495 = vadd.f32 %v494, 0.112945676
        %v496 = vmul.f32 %v478, %v495
        %v497 = vadd.f32 %v496, 0.4994258
        %v498 = vmul.f32 %v478, %v497
        %v499 = vadd.f32 %v498, 1.0
        %v500 = vrcp.pop %v499
        %v501 = vmul.f32 %v499, %v500
        %v502 = vsub.f32 1.0, %v501
        %v503 = vmul.f32 %v500, %v502
        %v504 = vadd.f32 %v500, %v503
        %vm505 = vweird.f32 %v499
        %vm506 = vweird.f32 %v500
        %vm507 = vmor %vm505, %vm506
        %v508 = vsel %vm507, %v500, %v504
        %v509 = vand.u32 2147483647, %v499
        %vm510 = vcmp.eq.f32.partialorder %v509, 8.507059e+37
        %v511 = vand.u32 %v499, 2147483648
        %v512 = vor.u32 1.1754944e-38, %v511
        %v513 = vsel %vm510, %v512, %v508
        %v514 = vmul.f32 %v489, %v513
        %v515 = vmin.f32 %v514, 1.0
        %v516 = vmax.f32 %v515, -1.0
        %v517 = vmul.f32 %v435, %v435
        %v518 = vmin.f32 16.0, %v517
        %v519 = vmul.f32 %v518, 2.1237322e-06
        %v520 = vadd.f32 %v519, 0.00028619796
        %v521 = vmul.f32 %v518, %v520
        %v522 = vadd.f32 %v521, 0.0036580483
        %v523 = vmul.f32 %v518, %v522
        %v524 = vadd.f32 %v523, 0.05243302
        %v525 = vmul.f32 %v518, %v524
        %v526 = vadd.f32 %v525, 0.18741608
        %v527 = vmul.f32 %v518, %v526
        %v528 = vadd.f32 %v527, 1.1283791
        %v529 = vmul.f32 %v435, %v528
        %v530 = vmul.f32 %v518, 3.8918573e-05
        %v531 = vadd.f32 %v530, 0.001143296
        %v532 = vmul.f32 %v518, %v531
        %v533 = vadd.f32 %v532, 0.014752088
        %v534 = vmul.f32 %v518, %v533
        %v535 = vadd.f32 %v534, 0.112945676
        %v536 = vmul.f32 %v518, %v535
        %v537 = vadd.f32 %v536, 0.4994258
        %v538 = vmul.f32 %v518, %v537
        %v539 = vadd.f32 %v538, 1.0
        %v540 = vrcp.pop %v539
        %v541 = vmul.f32 %v539, %v540
        %v542 = vsub.f32 1.0, %v541
        %v543 = vmul.f32 %v540, %v542
        %v544 = vadd.f32 %v540, %v543
        %vm545 = vweird.f32 %v539
        %vm546 = vweird.f32 %v540
        %vm547 = vmor %vm545, %vm546
        %v548 = vsel %vm547, %v540, %v544
        %v549 = vand.u32 2147483647, %v539
        %vm550 = vcmp.eq.f32.partialorder %v549, 8.507059e+37
        %v551 = vand.u32 %v539, 2147483648
        %v552 = vor.u32 1.1754944e-38, %v551
        %v553 = vsel %vm550, %v552, %v548
        %v554 = vmul.f32 %v529, %v553
        %v555 = vmin.f32 %v554, 1.0
        %v556 = vmax.f32 %v555, -1.0
        %v557 = vmul.f32 %v436, %v436
        %v558 = vmin.f32 16.0, %v557
        %v559 = vmul.f32 %v558, 2.1237322e-06
        %v560 = vadd.f32 %v559, 0.00028619796
        %v561 = vmul.f32 %v558, %v560
        %v562 = vadd.f32 %v561, 0.0036580483
        %v563 = vmul.f32 %v558, %v562
        %v564 = vadd.f32 %v563, 0.05243302
        %v565 = vmul.f32 %v558, %v564
        %v566 = vadd.f32 %v565, 0.18741608
        %v567 = vmul.f32 %v558, %v566
        %v568 = vadd.f32 %v567, 1.1283791
        %v569 = vmul.f32 %v436, %v568
        %v570 = vmul.f32 %v558, 3.8918573e-05
        %v571 = vadd.f32 %v570, 0.001143296
        %v572 = vmul.f32 %v558, %v571
        %v573 = vadd.f32 %v572, 0.014752088
        %v574 = vmul.f32 %v558, %v573
        %v575 = vadd.f32 %v574, 0.112945676
        %v576 = vmul.f32 %v558, %v575
        %v577 = vadd.f32 %v576, 0.4994258
        %v578 = vmul.f32 %v558, %v577
        %v579 = vadd.f32 %v578, 1.0
        %v580 = vrcp.pop %v579
        %v581 = vmul.f32 %v579, %v580
        %v582 = vsub.f32 1.0, %v581
        %v583 = vmul.f32 %v580, %v582
        %v584 = vadd.f32 %v580, %v583
        %vm585 = vweird.f32 %v579
        %vm586 = vweird.f32 %v580
        %vm587 = vmor %vm585, %vm586
        %v588 = vsel %vm587, %v580, %v584
        %v589 = vand.u32 2147483647, %v579
        %vm590 = vcmp.eq.f32.partialorder %v589, 8.507059e+37
        %v591 = vand.u32 %v579, 2147483648
        %v592 = vor.u32 1.1754944e-38, %v591
        %v593 = vsel %vm590, %v592, %v588
        %v594 = vmul.f32 %v569, %v593
        %v595 = vmin.f32 %v594, 1.0
        %v596 = vmax.f32 %v595, -1.0
        %v597 = vadd.f32 %v476, 1.0
        %v598 = vadd.f32 %v516, 1.0
        %v599 = vadd.f32 %v556, 1.0
        %v600 = vadd.f32 %v596, 1.0
        %v601 = vmul.f32 %v429, %v597
        %v602 = vmul.f32 %v430, %v598
        %v603 = vmul.f32 %v431, %v599
        %v604 = vmul.f32 %v432, %v600
        %v605 = vld [vmem:[#allocation2] sm:$0xff]
        %v606 = vld [vmem:[#allocation2 + $0x8] sm:$0xff]
        %v607 = vld [vmem:[%s296] sm:$0xff]
        %v608 = vld [vmem:[%s296 + $0x8] sm:$0xff]
        %v609 = vld [vmem:[%s296 + $0x10] sm:$0xff]
        %v610 = vld [vmem:[%s296 + $0x18] sm:$0xff]
        %v611 = vld [vmem:[%s296 + $0x20] sm:$0xff]
        %v612 = vld [vmem:[%s296 + $0x28] sm:$0xff]
        %v613 = vld [vmem:[%s296 + $0x30] sm:$0xff]
        %v614 = vld [vmem:[%s296 + $0x38] sm:$0xff]
        %v615 = vld [vmem:[%s296 + $0x40] sm:$0xff]
        %v616 = vld [vmem:[%s296 + $0x48] sm:$0xff]
        %v617 = vld [vmem:[%s296 + $0x50] sm:$0xff]
        %v618 = vld [vmem:[%s296 + $0x58] sm:$0xff]
        %v619 = vld [vmem:[%s296 + $0x60] sm:$0xff]
        %v620 = vld [vmem:[%s296 + $0x68] sm:$0xff]
        %v621 = vld [vmem:[%s296 + $0x70] sm:$0xff]
        %v622 = vld [vmem:[%s296 + $0x78] sm:$0xff]
        %v623 = vld [vmem:[%s296 + $0x80] sm:$0xff]
        %v624 = vld [vmem:[%s296 + $0x88] sm:$0xff]
        %v625 = vld [vmem:[%s296 + $0x90] sm:$0xff]
        %v626 = vld [vmem:[%s296 + $0x98] sm:$0xff]
        %v627 = vld [vmem:[%s296 + $0xa0] sm:$0xff]
        %v628 = vld [vmem:[%s296 + $0xa8] sm:$0xff]
        %v629 = vld [vmem:[%s296 + $0xb0] sm:$0xff]
        %v630 = vld [vmem:[%s296 + $0xb8] sm:$0xff]
        %v631 = vld [vmem:[%s296 + $0xc0] sm:$0xff]
        %v632 = vld [vmem:[%s296 + $0xc8] sm:$0xff]
        %v633 = vld [vmem:[%s296 + $0xd0] sm:$0xff]
        %v634 = vld [vmem:[%s296 + $0xd8] sm:$0xff]
        %v635 = vld [vmem:[%s296 + $0xe0] sm:$0xff]
        %v636 = vld [vmem:[%s296 + $0xe8] sm:$0xff]
        %v637 = vld [vmem:[%s296 + $0xf0] sm:$0xff]
        %v638 = vld [vmem:[%s296 + $0xf8] sm:$0xff]
        %639 = vmatpush.msra.mxu0 %v622
        %640 = vmatpush.msra.mxu0 %v621
        %641 = vmatpush.msra.mxu0 %v620
        %642 = vmatpush.msra.mxu0 %v619
        %643 = vmatpush.msra.mxu0 %v618
        %644 = vmatpush.msra.mxu0 %v617
        %645 = vmatpush.msra.mxu0 %v616
        %646 = vmatpush.msra.mxu0 %v615
        %647 = vmatpush.msra.mxu0 %v614
        %648 = vmatpush.msra.mxu0 %v613
        %649 = vmatpush.msra.mxu0 %v612
        %650 = vmatpush.msra.mxu0 %v611
        %651 = vmatpush.msra.mxu0 %v610
        %652 = vmatpush.msra.mxu0 %v609
        %653 = vmatpush.msra.mxu0 %v608
        %654 = vmatpush.msra.mxu0 %v607
        %655 = vmatmul.f32.gmra.mxu0 %v601
        %v656 = vpop.f32.mrf.mxu0
        %v657 = vadd.f32 0.0, %v656
        %658 = vmatmul.f32.gmra.mxu0 %v603
        %v659 = vpop.f32.mrf.mxu0
        %v660 = vadd.f32 0.0, %v659
        %661 = vdwg.mxu0
        %662 = vmatpush.msra.mxu0 %v638
        %663 = vmatpush.msra.mxu0 %v637
        %664 = vmatpush.msra.mxu0 %v636
        %665 = vmatpush.msra.mxu0 %v635
        %666 = vmatpush.msra.mxu0 %v634
        %667 = vmatpush.msra.mxu0 %v633
        %668 = vmatpush.msra.mxu0 %v632
        %669 = vmatpush.msra.mxu0 %v631
        %670 = vmatpush.msra.mxu0 %v630
        %671 = vmatpush.msra.mxu0 %v629
        %672 = vmatpush.msra.mxu0 %v628
        %673 = vmatpush.msra.mxu0 %v627
        %674 = vmatpush.msra.mxu0 %v626
        %675 = vmatpush.msra.mxu0 %v625
        %676 = vmatpush.msra.mxu0 %v624
        %677 = vmatpush.msra.mxu0 %v623
        %678 = vmatmul.f32.gmra.mxu0 %v602
        %v679 = vpop.f32.mrf.mxu0
        %v680 = vadd.f32 %v657, %v679
        %681 = vmatmul.f32.gmra.mxu0 %v604
        %v682 = vpop.f32.mrf.mxu0
        %v683 = vadd.f32 %v660, %v682
        %684 = vdwg.mxu0
        %v685 = vadd.f32 %v605, %v680
        %v686 = vadd.f32 %v606, %v683
        %687 = vst [vmem:[#allocation2] sm:$0xff] %v685
        %688 = vst [vmem:[#allocation2 + $0x8] sm:$0xff] %v686
        %p689 = scmp.eq.s32.totalorder %s26, 1
        // Predicated region
        $region57: #{mpt_mlp.1} parent=39 // pred_check
          %p690 = pneg %p689
        $region58: #{mpt_mlp.1} parent=39 // pred_check_branch
          %692 = sbr.rel (%p690) target = $region60
        $region59: #{mpt_mlp.1} parent=39 // pred_region
          %v693 = vld [vmem:[#allocation2] sm:$0xff]
          %v694 = vld [vmem:[#allocation2 + $0x8] sm:$0xff]
          %v695 = vld [vmem:[%s4] sm:$0x1]
          %v697 = vperm.slane %v695, 0
          %v699 = vadd.f32 %v693, %v697
          %v700 = vadd.f32 %v694, %v697
          %701 = vst [vmem:[#allocation9] sm:$0xff] %v699
          %702 = vst [vmem:[#allocation9 + $0x8] sm:$0xff] %v700
        $region60: #{mpt_mlp.1} parent=39 // pred_fallthru
          _
        // Predicated region
        $region61: #{mpt_mlp.1} parent=39 // pred_check
          %p703 = pneg %p176
        $region62: #{mpt_mlp.1} parent=39 // pred_check_branch
          %705 = sbr.rel (%p703) target = $region64
        $region63: #{mpt_mlp.1} parent=39 // pred_region
          %s706 = smul.u32 2, %s25
          %708 = vsyncadd [#allocation5], 0
          %s709 = smul.addr %s706, 8
          %s710 = scalar_lea.hbm %s5, %s709
          %s711 = sshll.u32 [#allocation9], 4
          %s712 = int_to_ptr.vmem [resolvable:$true] %s711
          %s713 = sshll.u32 %s710, 4
          %s714 = int_to_ptr.hbm [resolvable:$true] %s713
          %719 = dma.vmem_to_hbm [thread:$0]  %s712, 256, %s714, [#allocation5], 128, 128, 8
        $region64: #{mpt_mlp.1} parent=39 // pred_fallthru
          _
        // Predicated region
        $region65: #{mpt_mlp.1} parent=39 // pred_check
          %p720 = pneg %p176
        $region66: #{mpt_mlp.1} parent=39 // pred_check_branch
          %722 = sbr.rel (%p720) target = $region68
        $region67: #{mpt_mlp.1} parent=39 // pred_region
          %724 = dma.done [#allocation5], 256
        $region68: #{mpt_mlp.1} parent=39 // pred_fallthru
          _
      $region40: #{mpt_mlp.1} parent=5 // pred_fallthru
        _
      %p725 = scmp.le.s32.totalorder 2, %s16
      // Predicated region
      $region69: #{mpt_mlp.1} parent=5 // pred_check
        %p726 = pneg %p725
      $region70: #{mpt_mlp.1} parent=5 // pred_check_branch
        %728 = sbr.rel (%p726) target = $region72
      $region71: #{mpt_mlp.1} parent=5 // pred_region
        %s729 = ssub.s32 %s16, 2
      $region72: #{mpt_mlp.1} parent=5 // pred_fallthru
        _
    $region6: #{mpt_mlp.1} parent=1 // loop_footer
      %s20 = sadd.s32 1, %s16
    $region7: #{mpt_mlp.1} parent=1 // loop_footer_branch
      %15 = sbr.rel target = $region3
    $region8: #{mpt_mlp.1} parent=1 // loop_exit
      _
    %730 = vsyncpa [#allocation4], 1
    %s731 = scalar_lea.sflag [#allocation4], 1
    %732 = vsyncpa %s731, 1
    %733 = vsyncpa [#allocation7], 1
    %s734 = scalar_lea.sflag [#allocation7], 1
    %735 = vsyncpa %s734, 1
    %736 = vsyncpa [#allocation5], 1
    %s737 = scalar_lea.sflag [#allocation5], 1
    %738 = vsyncpa %s737, 1

</llo_original>
